<compile_context>
chip_gen: v6e
topology: v6e:2x2x1
jax: 0.10.0
libtpu: 0.0.40
codegen_flags: <defaults>
</compile_context>

<pallas_src>
import math

import jax
import jax.numpy as jnp
import numpy as np
from jax import lax
from jax.experimental import pallas as pl
from jax.experimental.pallas import tpu as pltpu

_SUBLANE = 8                    # batch-tile sublane alignment
_DEFAULT_ROWS_PER_STEP = 256    # rows gathered per grid step
_UNROLL = 8                     # fori_loop unroll factor (ILP / loop overhead)


def _round_up(x, m):
    return (x + m - 1) // m * m


def _make_gather_kernel(rows_per_step):
    """Kernel for one batch tile: gather `rows_per_step` rows from the
    VMEM-resident tables into four (rows_per_step, C) output tiles."""

    def kernel(u_idx_ref, a_idx_ref, w_idx_ref, s_idx_ref,   # SMEM (scalar prefetch)
               user_tbl_ref, item_tbl_ref,                    # VMEM, resident tables
               u_out_ref, a_out_ref, w_out_ref, s_out_ref):   # VMEM (T, C) out tiles
        base = pl.program_id(0) * rows_per_step

        def body(t, carry):
            j = base + t                                       # global batch row
            u_out_ref[pl.ds(t, 1), :] = user_tbl_ref[pl.ds(u_idx_ref[j], 1), :]
            a_out_ref[pl.ds(t, 1), :] = item_tbl_ref[pl.ds(a_idx_ref[j], 1), :]
            w_out_ref[pl.ds(t, 1), :] = item_tbl_ref[pl.ds(w_idx_ref[j], 1), :]
            s_out_ref[pl.ds(t, 1), :] = item_tbl_ref[pl.ds(s_idx_ref[j], 1), :]
            return carry

        lax.fori_loop(0, rows_per_step, body, 0, unroll=_UNROLL)
        # TODO(synk): the reference forward also computes F.normalize(..., dim=-1)
        # "map" tensors but never returns them (dead code) -> intentionally omitted.

    return kernel


def structure_forward(users, adjacent_items, weak_items, strong_items,
                      user_structure, item_structure,
                      *, rows_per_step=_DEFAULT_ROWS_PER_STEP):
    """JAX wrapper. Returns (users_structure, adjacent_items_structure,
    weak_items_structure, strong_items_structure), matching the PyTorch forward."""
    assert user_structure.dtype == item_structure.dtype, (
        "user_structure and item_structure must share a dtype")

    b = users.shape[0]
    nu, c = user_structure.shape
    ni, ci = item_structure.shape
    assert ci == c, "embedding dims of the two tables must match"

    # Batch tile: many rows per grid step; always a multiple of 8 so the output
    # block is sublane-aligned.
    t = _round_up(min(rows_per_step, _round_up(b, _SUBLANE)), _SUBLANE)
    num_steps = pl.cdiv(b, t)
    b_pad = num_steps * t

    def prep(idx):
        idx = idx.astype(jnp.int32).reshape(b)
        if b_pad != b:
            # Pad with row index 0 so SMEM reads / table slices in the
            # (masked-out) tail of the last batch tile stay in-bounds.
            idx = jnp.pad(idx, (0, b_pad - b))
        return idx

    itemsize = jnp.dtype(user_structure.dtype).itemsize

    # Tables are VMEM-resident for the whole kernel (constant block index);
    # item_structure is passed exactly once and shared by the three item gathers.
    # TODO(synk): tables too large for VMEM (esp. v7x: 64 MiB physical) need an
    # HBM-table (memory_space=pl.ANY) + batched manual-DMA gather fallback.
    user_spec = pl.BlockSpec((nu, c), lambda i, u, a, w, s: (0, 0))
    item_spec = pl.BlockSpec((ni, c), lambda i, u, a, w, s: (0, 0))
    out_spec = pl.BlockSpec((t, c), lambda i, u, a, w, s: (i, 0))

    grid_spec = pltpu.PrefetchScalarGridSpec(
        num_scalar_prefetch=4,
        grid=(num_steps,),
        in_specs=[user_spec, item_spec],
        out_specs=[out_spec, out_spec, out_spec, out_spec],
    )

    out_shape = (
        jax.ShapeDtypeStruct((b, c), user_structure.dtype),
        jax.ShapeDtypeStruct((b, c), item_structure.dtype),
        jax.ShapeDtypeStruct((b, c), item_structure.dtype),
        jax.ShapeDtypeStruct((b, c), item_structure.dtype),
    )

    # Pure memory-movement kernel: advertise 0 flops to XLA's scheduler.
    table_bytes = (nu + ni) * c * itemsize
    out_bytes = 4 * b * c * itemsize
    idx_bytes = 4 * b_pad * 4
    cost = pl.CostEstimate(flops=0, transcendentals=0,
                           bytes_accessed=int(table_bytes + out_bytes + idx_bytes))

    # VMEM budget: resident tables (budgeted 2x for pipeline buffers) +
    # double-buffered output tiles + slack.  Cap at v7x's 64 MiB physical VMEM.
    vmem_needed = 2 * table_bytes + 2 * 4 * t * c * itemsize + (2 << 20)
    vmem_limit = int(min(max(vmem_needed, 32 << 20), 64 << 20))

    compiler_params = pltpu.CompilerParams(
        # Each grid step writes distinct output blocks -> parallel axis
        # (lets v7x split the batch across both TensorCores; harmless on v5e/v6e).
        dimension_semantics=("parallel",),
        vmem_limit_bytes=vmem_limit,
    )

    return pl.pallas_call(
        _make_gather_kernel(t),
        out_shape=out_shape,
        grid_spec=grid_spec,
        compiler_params=compiler_params,
        cost_estimate=cost,
    )(prep(users), prep(adjacent_items), prep(weak_items), prep(strong_items),
      user_structure, item_structure)


if __name__ == "__main__":
    # Small, module-consistent shapes.
    num_users = 16
    num_items = 32
    num_community = 32   # flags_obj.num_community
    batch = 8

    key = jax.random.PRNGKey(0)
    k_u, k_i, k_idx = jax.random.split(key, 3)

    # Deterministic init matching init_weight(): uniform(-stdv, stdv).
    stdv = 1.0 / math.sqrt(num_community)
    user_structure = jax.random.uniform(
        k_u, (num_users, num_community), jnp.float32, minval=-stdv, maxval=stdv)
    item_structure = jax.random.uniform(
        k_i, (num_items, num_community), jnp.float32, minval=-stdv, maxval=stdv)

    k1, k2, k3, k4 = jax.random.split(k_idx, 4)
    users = jax.random.randint(k1, (batch,), 0, num_users, jnp.int32)
    adjacent_items = jax.random.randint(k2, (batch,), 0, num_items, jnp.int32)
    weak_items = jax.random.randint(k3, (batch,), 0, num_items, jnp.int32)
    strong_items = jax.random.randint(k4, (batch,), 0, num_items, jnp.int32)

    def check(outs, idxs):
        refs = (user_structure[idxs[0]], item_structure[idxs[1]],
                item_structure[idxs[2]], item_structure[idxs[3]])
        for got, ref in zip(outs, refs):
            np.testing.assert_allclose(np.asarray(got), np.asarray(ref),
                                       rtol=1e-6, atol=1e-6)

    # 1) Default config (single grid step).
    outs = structure_forward(users, adjacent_items, weak_items, strong_items,
                             user_structure, item_structure)
    outs = jax.block_until_ready(outs)
    check(outs, (users, adjacent_items, weak_items, strong_items))

    # 2) Multi-step grid with a non-divisible batch (exercises padding + the
    #    masked boundary writeback path) using a deliberately tiny batch tile.
    batch2 = 20
    k5, k6, k7, k8 = jax.random.split(jax.random.PRNGKey(1), 4)
    users2 = jax.random.randint(k5, (batch2,), 0, num_users, jnp.int32)
    adj2 = jax.random.randint(k6, (batch2,), 0, num_items, jnp.int32)
    weak2 = jax.random.randint(k7, (batch2,), 0, num_items, jnp.int32)
    strong2 = jax.random.randint(k8, (batch2,), 0, num_items, jnp.int32)
    outs2 = structure_forward(users2, adj2, weak2, strong2,
                              user_structure, item_structure, rows_per_step=8)
    outs2 = jax.block_until_ready(outs2)
    check(outs2, (users2, adj2, weak2, strong2))

    print("KERNEL_OK")
</pallas_src>

<mosaic_0001>
module attributes {stable_mosaic.version = 11 : i64} {
  func.func @kernel(%arg0: i32, %arg1: memref<8xi32, #tpu.memory_space<smem>>, %arg2: memref<8xi32, #tpu.memory_space<smem>>, %arg3: memref<8xi32, #tpu.memory_space<smem>>, %arg4: memref<8xi32, #tpu.memory_space<smem>>, %arg5: memref<16x32xf32, #tpu.memory_space<vmem>>, %arg6: memref<32x32xf32, #tpu.memory_space<vmem>>, %arg7: memref<8x32xf32, #tpu.memory_space<vmem>>, %arg8: memref<8x32xf32, #tpu.memory_space<vmem>>, %arg9: memref<8x32xf32, #tpu.memory_space<vmem>>, %arg10: memref<8x32xf32, #tpu.memory_space<vmem>>) attributes {dimension_semantics = [#tpu.dimension_semantics<parallel>], iteration_bounds = array<i64: 1>, scalar_prefetch = 4 : i64, scratch_operands = 0 : i64, tpu.core_type = #tpu.core_type<tc>, window_params = [{pipeline_mode = #tpu.pipeline_mode<synchronous>, transform_indices = @transform_0, window_bounds = array<i64: 16, 32>}, {pipeline_mode = #tpu.pipeline_mode<synchronous>, transform_indices = @transform_1, window_bounds = array<i64: 32, 32>}, {transform_indices = @transform_2, window_bounds = array<i64: 8, 32>}, {transform_indices = @transform_3, window_bounds = array<i64: 8, 32>}, {transform_indices = @transform_4, window_bounds = array<i64: 8, 32>}, {transform_indices = @transform_5, window_bounds = array<i64: 8, 32>}]} {
    %c8_i32 = arith.constant 8 : i32
    %0 = arith.muli %arg0, %c8_i32 : i32
    %c0_i32 = arith.constant 0 : i32
    %1 = arith.addi %0, %c0_i32 : i32
    %2 = arith.index_cast %1 : i32 to index
    %3 = memref.load %arg1[%2] : memref<8xi32, #tpu.memory_space<smem>>
    %4 = arith.index_cast %3 : i32 to index
    %c0 = arith.constant 0 : index
    %5 = vector.load %arg5[%4, %c0] : memref<16x32xf32, #tpu.memory_space<vmem>>, vector<1x32xf32>
    %6 = arith.index_cast %c0_i32 : i32 to index
    %c0_0 = arith.constant 0 : index
    %7 = vector.load %arg7[%6, %c0_0] : memref<8x32xf32, #tpu.memory_space<vmem>>, vector<1x32xf32>
    tpu.vector_store %arg7[%6, %c0_0], %5 {strides = array<i32>} : memref<8x32xf32, #tpu.memory_space<vmem>>, vector<1x32xf32>,
    %8 = arith.index_cast %1 : i32 to index
    %9 = memref.load %arg2[%8] : memref<8xi32, #tpu.memory_space<smem>>
    %10 = arith.index_cast %9 : i32 to index
    %c0_1 = arith.constant 0 : index
    %11 = vector.load %arg6[%10, %c0_1] : memref<32x32xf32, #tpu.memory_space<vmem>>, vector<1x32xf32>
    %12 = arith.index_cast %c0_i32 : i32 to index
    %c0_2 = arith.constant 0 : index
    %13 = vector.load %arg8[%12, %c0_2] : memref<8x32xf32, #tpu.memory_space<vmem>>, vector<1x32xf32>
    tpu.vector_store %arg8[%12, %c0_2], %11 {strides = array<i32>} : memref<8x32xf32, #tpu.memory_space<vmem>>, vector<1x32xf32>,
    %14 = arith.index_cast %1 : i32 to index
    %15 = memref.load %arg3[%14] : memref<8xi32, #tpu.memory_space<smem>>
    %16 = arith.index_cast %15 : i32 to index
    %c0_3 = arith.constant 0 : index
    %17 = vector.load %arg6[%16, %c0_3] : memref<32x32xf32, #tpu.memory_space<vmem>>, vector<1x32xf32>
    %18 = arith.index_cast %c0_i32 : i32 to index
    %c0_4 = arith.constant 0 : index
    %19 = vector.load %arg9[%18, %c0_4] : memref<8x32xf32, #tpu.memory_space<vmem>>, vector<1x32xf32>
    tpu.vector_store %arg9[%18, %c0_4], %17 {strides = array<i32>} : memref<8x32xf32, #tpu.memory_space<vmem>>, vector<1x32xf32>,
    %20 = arith.index_cast %1 : i32 to index
    %21 = memref.load %arg4[%20] : memref<8xi32, #tpu.memory_space<smem>>
    %22 = arith.index_cast %21 : i32 to index
    %c0_5 = arith.constant 0 : index
    %23 = vector.load %arg6[%22, %c0_5] : memref<32x32xf32, #tpu.memory_space<vmem>>, vector<1x32xf32>
    %24 = arith.index_cast %c0_i32 : i32 to index
    %c0_6 = arith.constant 0 : index
    %25 = vector.load %arg10[%24, %c0_6] : memref<8x32xf32, #tpu.memory_space<vmem>>, vector<1x32xf32>
    tpu.vector_store %arg10[%24, %c0_6], %23 {strides = array<i32>} : memref<8x32xf32, #tpu.memory_space<vmem>>, vector<1x32xf32>,
    %c1_i32 = arith.constant 1 : i32
    %26 = arith.addi %0, %c1_i32 : i32
    %27 = arith.index_cast %26 : i32 to index
    %28 = memref.load %arg1[%27] : memref<8xi32, #tpu.memory_space<smem>>
    %29 = arith.index_cast %28 : i32 to index
    %c0_7 = arith.constant 0 : index
    %30 = vector.load %arg5[%29, %c0_7] : memref<16x32xf32, #tpu.memory_space<vmem>>, vector<1x32xf32>
    %31 = arith.index_cast %c1_i32 : i32 to index
    %c0_8 = arith.constant 0 : index
    %32 = vector.load %arg7[%31, %c0_8] : memref<8x32xf32, #tpu.memory_space<vmem>>, vector<1x32xf32>
    tpu.vector_store %arg7[%31, %c0_8], %30 {strides = array<i32>} : memref<8x32xf32, #tpu.memory_space<vmem>>, vector<1x32xf32>,
    %33 = arith.index_cast %26 : i32 to index
    %34 = memref.load %arg2[%33] : memref<8xi32, #tpu.memory_space<smem>>
    %35 = arith.index_cast %34 : i32 to index
    %c0_9 = arith.constant 0 : index
    %36 = vector.load %arg6[%35, %c0_9] : memref<32x32xf32, #tpu.memory_space<vmem>>, vector<1x32xf32>
    %37 = arith.index_cast %c1_i32 : i32 to index
    %c0_10 = arith.constant 0 : index
    %38 = vector.load %arg8[%37, %c0_10] : memref<8x32xf32, #tpu.memory_space<vmem>>, vector<1x32xf32>
    tpu.vector_store %arg8[%37, %c0_10], %36 {strides = array<i32>} : memref<8x32xf32, #tpu.memory_space<vmem>>, vector<1x32xf32>,
    %39 = arith.index_cast %26 : i32 to index
    %40 = memref.load %arg3[%39] : memref<8xi32, #tpu.memory_space<smem>>
    %41 = arith.index_cast %40 : i32 to index
    %c0_11 = arith.constant 0 : index
    %42 = vector.load %arg6[%41, %c0_11] : memref<32x32xf32, #tpu.memory_space<vmem>>, vector<1x32xf32>
    %43 = arith.index_cast %c1_i32 : i32 to index
    %c0_12 = arith.constant 0 : index
    %44 = vector.load %arg9[%43, %c0_12] : memref<8x32xf32, #tpu.memory_space<vmem>>, vector<1x32xf32>
    tpu.vector_store %arg9[%43, %c0_12], %42 {strides = array<i32>} : memref<8x32xf32, #tpu.memory_space<vmem>>, vector<1x32xf32>,
    %45 = arith.index_cast %26 : i32 to index
    %46 = memref.load %arg4[%45] : memref<8xi32, #tpu.memory_space<smem>>
    %47 = arith.index_cast %46 : i32 to index
    %c0_13 = arith.constant 0 : index
    %48 = vector.load %arg6[%47, %c0_13] : memref<32x32xf32, #tpu.memory_space<vmem>>, vector<1x32xf32>
    %49 = arith.index_cast %c1_i32 : i32 to index
    %c0_14 = arith.constant 0 : index
    %50 = vector.load %arg10[%49, %c0_14] : memref<8x32xf32, #tpu.memory_space<vmem>>, vector<1x32xf32>
    tpu.vector_store %arg10[%49, %c0_14], %48 {strides = array<i32>} : memref<8x32xf32, #tpu.memory_space<vmem>>, vector<1x32xf32>,
    %c2_i32 = arith.constant 2 : i32
    %51 = arith.addi %0, %c2_i32 : i32
    %52 = arith.index_cast %51 : i32 to index
    %53 = memref.load %arg1[%52] : memref<8xi32, #tpu.memory_space<smem>>
    %54 = arith.index_cast %53 : i32 to index
    %c0_15 = arith.constant 0 : index
    %55 = vector.load %arg5[%54, %c0_15] : memref<16x32xf32, #tpu.memory_space<vmem>>, vector<1x32xf32>
    %56 = arith.index_cast %c2_i32 : i32 to index
    %c0_16 = arith.constant 0 : index
    %57 = vector.load %arg7[%56, %c0_16] : memref<8x32xf32, #tpu.memory_space<vmem>>, vector<1x32xf32>
    tpu.vector_store %arg7[%56, %c0_16], %55 {strides = array<i32>} : memref<8x32xf32, #tpu.memory_space<vmem>>, vector<1x32xf32>,
    %58 = arith.index_cast %51 : i32 to index
    %59 = memref.load %arg2[%58] : memref<8xi32, #tpu.memory_space<smem>>
    %60 = arith.index_cast %59 : i32 to index
    %c0_17 = arith.constant 0 : index
    %61 = vector.load %arg6[%60, %c0_17] : memref<32x32xf32, #tpu.memory_space<vmem>>, vector<1x32xf32>
    %62 = arith.index_cast %c2_i32 : i32 to index
    %c0_18 = arith.constant 0 : index
    %63 = vector.load %arg8[%62, %c0_18] : memref<8x32xf32, #tpu.memory_space<vmem>>, vector<1x32xf32>
    tpu.vector_store %arg8[%62, %c0_18], %61 {strides = array<i32>} : memref<8x32xf32, #tpu.memory_space<vmem>>, vector<1x32xf32>,
    %64 = arith.index_cast %51 : i32 to index
    %65 = memref.load %arg3[%64] : memref<8xi32, #tpu.memory_space<smem>>
    %66 = arith.index_cast %65 : i32 to index
    %c0_19 = arith.constant 0 : index
    %67 = vector.load %arg6[%66, %c0_19] : memref<32x32xf32, #tpu.memory_space<vmem>>, vector<1x32xf32>
    %68 = arith.index_cast %c2_i32 : i32 to index
    %c0_20 = arith.constant 0 : index
    %69 = vector.load %arg9[%68, %c0_20] : memref<8x32xf32, #tpu.memory_space<vmem>>, vector<1x32xf32>
    tpu.vector_store %arg9[%68, %c0_20], %67 {strides = array<i32>} : memref<8x32xf32, #tpu.memory_space<vmem>>, vector<1x32xf32>,
    %70 = arith.index_cast %51 : i32 to index
    %71 = memref.load %arg4[%70] : memref<8xi32, #tpu.memory_space<smem>>
    %72 = arith.index_cast %71 : i32 to index
    %c0_21 = arith.constant 0 : index
    %73 = vector.load %arg6[%72, %c0_21] : memref<32x32xf32, #tpu.memory_space<vmem>>, vector<1x32xf32>
    %74 = arith.index_cast %c2_i32 : i32 to index
    %c0_22 = arith.constant 0 : index
    %75 = vector.load %arg10[%74, %c0_22] : memref<8x32xf32, #tpu.memory_space<vmem>>, vector<1x32xf32>
    tpu.vector_store %arg10[%74, %c0_22], %73 {strides = array<i32>} : memref<8x32xf32, #tpu.memory_space<vmem>>, vector<1x32xf32>,
    %c3_i32 = arith.constant 3 : i32
    %76 = arith.addi %0, %c3_i32 : i32
    %77 = arith.index_cast %76 : i32 to index
    %78 = memref.load %arg1[%77] : memref<8xi32, #tpu.memory_space<smem>>
    %79 = arith.index_cast %78 : i32 to index
    %c0_23 = arith.constant 0 : index
    %80 = vector.load %arg5[%79, %c0_23] : memref<16x32xf32, #tpu.memory_space<vmem>>, vector<1x32xf32>
    %81 = arith.index_cast %c3_i32 : i32 to index
    %c0_24 = arith.constant 0 : index
    %82 = vector.load %arg7[%81, %c0_24] : memref<8x32xf32, #tpu.memory_space<vmem>>, vector<1x32xf32>
    tpu.vector_store %arg7[%81, %c0_24], %80 {strides = array<i32>} : memref<8x32xf32, #tpu.memory_space<vmem>>, vector<1x32xf32>,
    %83 = arith.index_cast %76 : i32 to index
    %84 = memref.load %arg2[%83] : memref<8xi32, #tpu.memory_space<smem>>
    %85 = arith.index_cast %84 : i32 to index
    %c0_25 = arith.constant 0 : index
    %86 = vector.load %arg6[%85, %c0_25] : memref<32x32xf32, #tpu.memory_space<vmem>>, vector<1x32xf32>
    %87 = arith.index_cast %c3_i32 : i32 to index
    %c0_26 = arith.constant 0 : index
    %88 = vector.load %arg8[%87, %c0_26] : memref<8x32xf32, #tpu.memory_space<vmem>>, vector<1x32xf32>
    tpu.vector_store %arg8[%87, %c0_26], %86 {strides = array<i32>} : memref<8x32xf32, #tpu.memory_space<vmem>>, vector<1x32xf32>,
    %89 = arith.index_cast %76 : i32 to index
    %90 = memref.load %arg3[%89] : memref<8xi32, #tpu.memory_space<smem>>
    %91 = arith.index_cast %90 : i32 to index
    %c0_27 = arith.constant 0 : index
    %92 = vector.load %arg6[%91, %c0_27] : memref<32x32xf32, #tpu.memory_space<vmem>>, vector<1x32xf32>
    %93 = arith.index_cast %c3_i32 : i32 to index
    %c0_28 = arith.constant 0 : index
    %94 = vector.load %arg9[%93, %c0_28] : memref<8x32xf32, #tpu.memory_space<vmem>>, vector<1x32xf32>
    tpu.vector_store %arg9[%93, %c0_28], %92 {strides = array<i32>} : memref<8x32xf32, #tpu.memory_space<vmem>>, vector<1x32xf32>,
    %95 = arith.index_cast %76 : i32 to index
    %96 = memref.load %arg4[%95] : memref<8xi32, #tpu.memory_space<smem>>
    %97 = arith.index_cast %96 : i32 to index
    %c0_29 = arith.constant 0 : index
    %98 = vector.load %arg6[%97, %c0_29] : memref<32x32xf32, #tpu.memory_space<vmem>>, vector<1x32xf32>
    %99 = arith.index_cast %c3_i32 : i32 to index
    %c0_30 = arith.constant 0 : index
    %100 = vector.load %arg10[%99, %c0_30] : memref<8x32xf32, #tpu.memory_space<vmem>>, vector<1x32xf32>
    tpu.vector_store %arg10[%99, %c0_30], %98 {strides = array<i32>} : memref<8x32xf32, #tpu.memory_space<vmem>>, vector<1x32xf32>,
    %c4_i32 = arith.constant 4 : i32
    %101 = arith.addi %0, %c4_i32 : i32
    %102 = arith.index_cast %101 : i32 to index
    %103 = memref.load %arg1[%102] : memref<8xi32, #tpu.memory_space<smem>>
    %104 = arith.index_cast %103 : i32 to index
    %c0_31 = arith.constant 0 : index
    %105 = vector.load %arg5[%104, %c0_31] : memref<16x32xf32, #tpu.memory_space<vmem>>, vector<1x32xf32>
    %106 = arith.index_cast %c4_i32 : i32 to index
    %c0_32 = arith.constant 0 : index
    %107 = vector.load %arg7[%106, %c0_32] : memref<8x32xf32, #tpu.memory_space<vmem>>, vector<1x32xf32>
    tpu.vector_store %arg7[%106, %c0_32], %105 {strides = array<i32>} : memref<8x32xf32, #tpu.memory_space<vmem>>, vector<1x32xf32>,
    %108 = arith.index_cast %101 : i32 to index
    %109 = memref.load %arg2[%108] : memref<8xi32, #tpu.memory_space<smem>>
    %110 = arith.index_cast %109 : i32 to index
    %c0_33 = arith.constant 0 : index
    %111 = vector.load %arg6[%110, %c0_33] : memref<32x32xf32, #tpu.memory_space<vmem>>, vector<1x32xf32>
    %112 = arith.index_cast %c4_i32 : i32 to index
    %c0_34 = arith.constant 0 : index
    %113 = vector.load %arg8[%112, %c0_34] : memref<8x32xf32, #tpu.memory_space<vmem>>, vector<1x32xf32>
    tpu.vector_store %arg8[%112, %c0_34], %111 {strides = array<i32>} : memref<8x32xf32, #tpu.memory_space<vmem>>, vector<1x32xf32>,
    %114 = arith.index_cast %101 : i32 to index
    %115 = memref.load %arg3[%114] : memref<8xi32, #tpu.memory_space<smem>>
    %116 = arith.index_cast %115 : i32 to index
    %c0_35 = arith.constant 0 : index
    %117 = vector.load %arg6[%116, %c0_35] : memref<32x32xf32, #tpu.memory_space<vmem>>, vector<1x32xf32>
    %118 = arith.index_cast %c4_i32 : i32 to index
    %c0_36 = arith.constant 0 : index
    %119 = vector.load %arg9[%118, %c0_36] : memref<8x32xf32, #tpu.memory_space<vmem>>, vector<1x32xf32>
    tpu.vector_store %arg9[%118, %c0_36], %117 {strides = array<i32>} : memref<8x32xf32, #tpu.memory_space<vmem>>, vector<1x32xf32>,
    %120 = arith.index_cast %101 : i32 to index
    %121 = memref.load %arg4[%120] : memref<8xi32, #tpu.memory_space<smem>>
    %122 = arith.index_cast %121 : i32 to index
    %c0_37 = arith.constant 0 : index
    %123 = vector.load %arg6[%122, %c0_37] : memref<32x32xf32, #tpu.memory_space<vmem>>, vector<1x32xf32>
    %124 = arith.index_cast %c4_i32 : i32 to index
    %c0_38 = arith.constant 0 : index
    %125 = vector.load %arg10[%124, %c0_38] : memref<8x32xf32, #tpu.memory_space<vmem>>, vector<1x32xf32>
    tpu.vector_store %arg10[%124, %c0_38], %123 {strides = array<i32>} : memref<8x32xf32, #tpu.memory_space<vmem>>, vector<1x32xf32>,
    %c5_i32 = arith.constant 5 : i32
    %126 = arith.addi %0, %c5_i32 : i32
    %127 = arith.index_cast %126 : i32 to index
    %128 = memref.load %arg1[%127] : memref<8xi32, #tpu.memory_space<smem>>
    %129 = arith.index_cast %128 : i32 to index
    %c0_39 = arith.constant 0 : index
    %130 = vector.load %arg5[%129, %c0_39] : memref<16x32xf32, #tpu.memory_space<vmem>>, vector<1x32xf32>
    %131 = arith.index_cast %c5_i32 : i32 to index
    %c0_40 = arith.constant 0 : index
    %132 = vector.load %arg7[%131, %c0_40] : memref<8x32xf32, #tpu.memory_space<vmem>>, vector<1x32xf32>
    tpu.vector_store %arg7[%131, %c0_40], %130 {strides = array<i32>} : memref<8x32xf32, #tpu.memory_space<vmem>>, vector<1x32xf32>,
    %133 = arith.index_cast %126 : i32 to index
    %134 = memref.load %arg2[%133] : memref<8xi32, #tpu.memory_space<smem>>
    %135 = arith.index_cast %134 : i32 to index
    %c0_41 = arith.constant 0 : index
    %136 = vector.load %arg6[%135, %c0_41] : memref<32x32xf32, #tpu.memory_space<vmem>>, vector<1x32xf32>
    %137 = arith.index_cast %c5_i32 : i32 to index
    %c0_42 = arith.constant 0 : index
    %138 = vector.load %arg8[%137, %c0_42] : memref<8x32xf32, #tpu.memory_space<vmem>>, vector<1x32xf32>
    tpu.vector_store %arg8[%137, %c0_42], %136 {strides = array<i32>} : memref<8x32xf32, #tpu.memory_space<vmem>>, vector<1x32xf32>,
    %139 = arith.index_cast %126 : i32 to index
    %140 = memref.load %arg3[%139] : memref<8xi32, #tpu.memory_space<smem>>
    %141 = arith.index_cast %140 : i32 to index
    %c0_43 = arith.constant 0 : index
    %142 = vector.load %arg6[%141, %c0_43] : memref<32x32xf32, #tpu.memory_space<vmem>>, vector<1x32xf32>
    %143 = arith.index_cast %c5_i32 : i32 to index
    %c0_44 = arith.constant 0 : index
    %144 = vector.load %arg9[%143, %c0_44] : memref<8x32xf32, #tpu.memory_space<vmem>>, vector<1x32xf32>
    tpu.vector_store %arg9[%143, %c0_44], %142 {strides = array<i32>} : memref<8x32xf32, #tpu.memory_space<vmem>>, vector<1x32xf32>,
    %145 = arith.index_cast %126 : i32 to index
    %146 = memref.load %arg4[%145] : memref<8xi32, #tpu.memory_space<smem>>
    %147 = arith.index_cast %146 : i32 to index
    %c0_45 = arith.constant 0 : index
    %148 = vector.load %arg6[%147, %c0_45] : memref<32x32xf32, #tpu.memory_space<vmem>>, vector<1x32xf32>
    %149 = arith.index_cast %c5_i32 : i32 to index
    %c0_46 = arith.constant 0 : index
    %150 = vector.load %arg10[%149, %c0_46] : memref<8x32xf32, #tpu.memory_space<vmem>>, vector<1x32xf32>
    tpu.vector_store %arg10[%149, %c0_46], %148 {strides = array<i32>} : memref<8x32xf32, #tpu.memory_space<vmem>>, vector<1x32xf32>,
    %c6_i32 = arith.constant 6 : i32
    %151 = arith.addi %0, %c6_i32 : i32
    %152 = arith.index_cast %151 : i32 to index
    %153 = memref.load %arg1[%152] : memref<8xi32, #tpu.memory_space<smem>>
    %154 = arith.index_cast %153 : i32 to index
    %c0_47 = arith.constant 0 : index
    %155 = vector.load %arg5[%154, %c0_47] : memref<16x32xf32, #tpu.memory_space<vmem>>, vector<1x32xf32>
    %156 = arith.index_cast %c6_i32 : i32 to index
    %c0_48 = arith.constant 0 : index
    %157 = vector.load %arg7[%156, %c0_48] : memref<8x32xf32, #tpu.memory_space<vmem>>, vector<1x32xf32>
    tpu.vector_store %arg7[%156, %c0_48], %155 {strides = array<i32>} : memref<8x32xf32, #tpu.memory_space<vmem>>, vector<1x32xf32>,
    %158 = arith.index_cast %151 : i32 to index
    %159 = memref.load %arg2[%158] : memref<8xi32, #tpu.memory_space<smem>>
    %160 = arith.index_cast %159 : i32 to index
    %c0_49 = arith.constant 0 : index
    %161 = vector.load %arg6[%160, %c0_49] : memref<32x32xf32, #tpu.memory_space<vmem>>, vector<1x32xf32>
    %162 = arith.index_cast %c6_i32 : i32 to index
    %c0_50 = arith.constant 0 : index
    %163 = vector.load %arg8[%162, %c0_50] : memref<8x32xf32, #tpu.memory_space<vmem>>, vector<1x32xf32>
    tpu.vector_store %arg8[%162, %c0_50], %161 {strides = array<i32>} : memref<8x32xf32, #tpu.memory_space<vmem>>, vector<1x32xf32>,
    %164 = arith.index_cast %151 : i32 to index
    %165 = memref.load %arg3[%164] : memref<8xi32, #tpu.memory_space<smem>>
    %166 = arith.index_cast %165 : i32 to index
    %c0_51 = arith.constant 0 : index
    %167 = vector.load %arg6[%166, %c0_51] : memref<32x32xf32, #tpu.memory_space<vmem>>, vector<1x32xf32>
    %168 = arith.index_cast %c6_i32 : i32 to index
    %c0_52 = arith.constant 0 : index
    %169 = vector.load %arg9[%168, %c0_52] : memref<8x32xf32, #tpu.memory_space<vmem>>, vector<1x32xf32>
    tpu.vector_store %arg9[%168, %c0_52], %167 {strides = array<i32>} : memref<8x32xf32, #tpu.memory_space<vmem>>, vector<1x32xf32>,
    %170 = arith.index_cast %151 : i32 to index
    %171 = memref.load %arg4[%170] : memref<8xi32, #tpu.memory_space<smem>>
    %172 = arith.index_cast %171 : i32 to index
    %c0_53 = arith.constant 0 : index
    %173 = vector.load %arg6[%172, %c0_53] : memref<32x32xf32, #tpu.memory_space<vmem>>, vector<1x32xf32>
    %174 = arith.index_cast %c6_i32 : i32 to index
    %c0_54 = arith.constant 0 : index
    %175 = vector.load %arg10[%174, %c0_54] : memref<8x32xf32, #tpu.memory_space<vmem>>, vector<1x32xf32>
    tpu.vector_store %arg10[%174, %c0_54], %173 {strides = array<i32>} : memref<8x32xf32, #tpu.memory_space<vmem>>, vector<1x32xf32>,
    %c7_i32 = arith.constant 7 : i32
    %176 = arith.addi %0, %c7_i32 : i32
    %177 = arith.index_cast %176 : i32 to index
    %178 = memref.load %arg1[%177] : memref<8xi32, #tpu.memory_space<smem>>
    %179 = arith.index_cast %178 : i32 to index
    %c0_55 = arith.constant 0 : index
    %180 = vector.load %arg5[%179, %c0_55] : memref<16x32xf32, #tpu.memory_space<vmem>>, vector<1x32xf32>
    %181 = arith.index_cast %c7_i32 : i32 to index
    %c0_56 = arith.constant 0 : index
    %182 = vector.load %arg7[%181, %c0_56] : memref<8x32xf32, #tpu.memory_space<vmem>>, vector<1x32xf32>
    tpu.vector_store %arg7[%181, %c0_56], %180 {strides = array<i32>} : memref<8x32xf32, #tpu.memory_space<vmem>>, vector<1x32xf32>,
    %183 = arith.index_cast %176 : i32 to index
    %184 = memref.load %arg2[%183] : memref<8xi32, #tpu.memory_space<smem>>
    %185 = arith.index_cast %184 : i32 to index
    %c0_57 = arith.constant 0 : index
    %186 = vector.load %arg6[%185, %c0_57] : memref<32x32xf32, #tpu.memory_space<vmem>>, vector<1x32xf32>
    %187 = arith.index_cast %c7_i32 : i32 to index
    %c0_58 = arith.constant 0 : index
    %188 = vector.load %arg8[%187, %c0_58] : memref<8x32xf32, #tpu.memory_space<vmem>>, vector<1x32xf32>
    tpu.vector_store %arg8[%187, %c0_58], %186 {strides = array<i32>} : memref<8x32xf32, #tpu.memory_space<vmem>>, vector<1x32xf32>,
    %189 = arith.index_cast %176 : i32 to index
    %190 = memref.load %arg3[%189] : memref<8xi32, #tpu.memory_space<smem>>
    %191 = arith.index_cast %190 : i32 to index
    %c0_59 = arith.constant 0 : index
    %192 = vector.load %arg6[%191, %c0_59] : memref<32x32xf32, #tpu.memory_space<vmem>>, vector<1x32xf32>
    %193 = arith.index_cast %c7_i32 : i32 to index
    %c0_60 = arith.constant 0 : index
    %194 = vector.load %arg9[%193, %c0_60] : memref<8x32xf32, #tpu.memory_space<vmem>>, vector<1x32xf32>
    tpu.vector_store %arg9[%193, %c0_60], %192 {strides = array<i32>} : memref<8x32xf32, #tpu.memory_space<vmem>>, vector<1x32xf32>,
    %195 = arith.index_cast %176 : i32 to index
    %196 = memref.load %arg4[%195] : memref<8xi32, #tpu.memory_space<smem>>
    %197 = arith.index_cast %196 : i32 to index
    %c0_61 = arith.constant 0 : index
    %198 = vector.load %arg6[%197, %c0_61] : memref<32x32xf32, #tpu.memory_space<vmem>>, vector<1x32xf32>
    %199 = arith.index_cast %c7_i32 : i32 to index
    %c0_62 = arith.constant 0 : index
    %200 = vector.load %arg10[%199, %c0_62] : memref<8x32xf32, #tpu.memory_space<vmem>>, vector<1x32xf32>
    tpu.vector_store %arg10[%199, %c0_62], %198 {strides = array<i32>} : memref<8x32xf32, #tpu.memory_space<vmem>>, vector<1x32xf32>,
    %c8_i32_63 = arith.constant 8 : i32
    return
  }
  func.func @transform_0(%arg0: i32, %arg1: memref<8xi32, #tpu.memory_space<smem>>, %arg2: memref<8xi32, #tpu.memory_space<smem>>, %arg3: memref<8xi32, #tpu.memory_space<smem>>, %arg4: memref<8xi32, #tpu.memory_space<smem>>) -> (i32, i32) {
    %c0_i32 = arith.constant 0 : i32
    %c0_i32_0 = arith.constant 0 : i32
    %c0_i32_1 = arith.constant 0 : i32
    return %c0_i32, %c0_i32_0 : i32, i32
  }
  func.func @transform_1(%arg0: i32, %arg1: memref<8xi32, #tpu.memory_space<smem>>, %arg2: memref<8xi32, #tpu.memory_space<smem>>, %arg3: memref<8xi32, #tpu.memory_space<smem>>, %arg4: memref<8xi32, #tpu.memory_space<smem>>) -> (i32, i32) {
    %c0_i32 = arith.constant 0 : i32
    %c0_i32_0 = arith.constant 0 : i32
    %c0_i32_1 = arith.constant 0 : i32
    return %c0_i32, %c0_i32_0 : i32, i32
  }
  func.func @transform_2(%arg0: i32, %arg1: memref<8xi32, #tpu.memory_space<smem>>, %arg2: memref<8xi32, #tpu.memory_space<smem>>, %arg3: memref<8xi32, #tpu.memory_space<smem>>, %arg4: memref<8xi32, #tpu.memory_space<smem>>) -> (i32, i32) {
    %c0_i32 = arith.constant 0 : i32
    %c0_i32_0 = arith.constant 0 : i32
    return %arg0, %c0_i32 : i32, i32
  }
  func.func @transform_3(%arg0: i32, %arg1: memref<8xi32, #tpu.memory_space<smem>>, %arg2: memref<8xi32, #tpu.memory_space<smem>>, %arg3: memref<8xi32, #tpu.memory_space<smem>>, %arg4: memref<8xi32, #tpu.memory_space<smem>>) -> (i32, i32) {
    %c0_i32 = arith.constant 0 : i32
    %c0_i32_0 = arith.constant 0 : i32
    return %arg0, %c0_i32 : i32, i32
  }
  func.func @transform_4(%arg0: i32, %arg1: memref<8xi32, #tpu.memory_space<smem>>, %arg2: memref<8xi32, #tpu.memory_space<smem>>, %arg3: memref<8xi32, #tpu.memory_space<smem>>, %arg4: memref<8xi32, #tpu.memory_space<smem>>) -> (i32, i32) {
    %c0_i32 = arith.constant 0 : i32
    %c0_i32_0 = arith.constant 0 : i32
    return %arg0, %c0_i32 : i32, i32
  }
  func.func @transform_5(%arg0: i32, %arg1: memref<8xi32, #tpu.memory_space<smem>>, %arg2: memref<8xi32, #tpu.memory_space<smem>>, %arg3: memref<8xi32, #tpu.memory_space<smem>>, %arg4: memref<8xi32, #tpu.memory_space<smem>>) -> (i32, i32) {
    %c0_i32 = arith.constant 0 : i32
    %c0_i32_0 = arith.constant 0 : i32
    return %arg0, %c0_i32 : i32, i32
  }
}

</mosaic_0001>

<llo_original>
// kernel: tpu_custom_call.1
$region0: #{tpu_custom_call.1}
  #allocation0 [shape = 'u32[]', space=smem, size = 0x4, offset = 0x4, fixed_abs, tag = 'smem constant byte address 0x4 - core index']
  #allocation1 [shape = 'u32[144,128]{1,0:T(1,128)}', space=vmem, size = 0x12000, scoped, tag = 'internal scratch']
  #allocation2 [shape = 's32[1]{0}', space=sflag, size = 0x4, scoped, tag = 'scoped memory for tpu_custom_call.1']
  #allocation3 [shape = 'u8[512]{0}', space=smem, size = 0x200, scoped, tag = 'prefetched SMEM operand 0']
  #allocation4 [shape = 'u8[512]{0}', space=smem, size = 0x200, scoped, tag = 'prefetched SMEM operand 1']
  #allocation5 [shape = 'u8[512]{0}', space=smem, size = 0x200, scoped, tag = 'prefetched SMEM operand 2']
  #allocation6 [shape = 'u8[512]{0}', space=smem, size = 0x200, scoped, tag = 'prefetched SMEM operand 3']
  %s0 = inlined_call_operand.hbm [shape: s32[8], index: 0, kind: input, shape index: {}]
  %s1 = inlined_call_operand.vmem [shape: s32[8], index: 1, kind: input, shape index: {}]
  %s2 = inlined_call_operand.vmem [shape: s32[8], index: 2, kind: input, shape index: {}]
  %s3 = inlined_call_operand.vmem [shape: s32[8], index: 3, kind: input, shape index: {}]
  %s4 = inlined_call_operand.hbm [shape: f32[16,32], index: 4, kind: input, shape index: {}]
  %s5 = inlined_call_operand.hbm [shape: f32[32,32], index: 5, kind: input, shape index: {}]
  %s6 = inlined_call_operand.hbm [shape: f32[8,32], index: 6, kind: output, shape index: {0}]
  %s7 = inlined_call_operand.hbm [shape: f32[8,32], index: 7, kind: output, shape index: {1}]
  %s8 = inlined_call_operand.hbm [shape: f32[8,32], index: 8, kind: output, shape index: {2}]
  %s9 = inlined_call_operand.hbm [shape: f32[8,32], index: 9, kind: output, shape index: {3}]
  %10 = xla_tuple %s6, %s7, %s8, %s9
  %s11 = sld [smem:[#allocation0]]
  $region50: #{tpu_custom_call.1} parent=0
    _
  %s13 = ssub.s32 1, %s11
  %s14 = scalar_select 0, %s13, %s11
  %16 = dma.hbm_to_smem %s0, 16, [#allocation3], [#allocation2]
  %s17 = sshll.u32 %s1, 4
  %s18 = int_to_ptr.vmem [resolvable:$true] %s17
  %20 = dma.vmem_to_smem %s18, 16, [#allocation4], [#allocation2]
  %s21 = sshll.u32 %s2, 4
  %s22 = int_to_ptr.vmem [resolvable:$true] %s21
  %24 = dma.vmem_to_smem %s22, 16, [#allocation5], [#allocation2]
  %s25 = sshll.u32 %s3, 4
  %s26 = int_to_ptr.vmem [resolvable:$true] %s25
  %28 = dma.vmem_to_smem %s26, 16, [#allocation6], [#allocation2]
  %29 = dma.done [#allocation2], 64
  %30 = sfence
  $region1: #{tpu_custom_call.1} parent=0
    #allocation7 [shape = 'u8[8192]{0}', space=vmem, size = 0x2000, scoped, tag = 'input window, operand 4, single buffered']
    #allocation8 [shape = 's32[1]{0}', space=sflag, size = 0x4, scoped, tag = 'scoped memory for tpu_custom_call.1']
    #allocation9 [shape = 's32[1]{0}', space=sflag, size = 0x4, scoped, tag = 'scoped memory for tpu_custom_call.1']
    #allocation10 [shape = 'u8[16384]{0}', space=vmem, size = 0x4000, scoped, tag = 'input window, operand 5, single buffered']
    #allocation11 [shape = 's32[1]{0}', space=sflag, size = 0x4, scoped, tag = 'scoped memory for tpu_custom_call.1']
    #allocation12 [shape = 'u8[4096]{0}', space=vmem, size = 0x1000, scoped, tag = 'output window, operand 0, single buffered']
    #allocation13 [shape = 'u8[4096]{0}', space=vmem, size = 0x1000, scoped, tag = 'output window, operand 1, single buffered']
    #allocation14 [shape = 's32[1]{0}', space=sflag, size = 0x4, scoped, tag = 'scoped memory for tpu_custom_call.1']
    #allocation15 [shape = 'u8[4096]{0}', space=vmem, size = 0x1000, scoped, tag = 'output window, operand 2, single buffered']
    #allocation16 [shape = 'u8[4096]{0}', space=vmem, size = 0x1000, scoped, tag = 'output window, operand 3, single buffered']
    #allocation17 [shape = 's32[1]{0}', space=sflag, size = 0x4, scoped, tag = 'scoped memory for tpu_custom_call.1']
    %31 = vsyncpa [#allocation8], 0
    %32 = vsyncpa [#allocation11], 0
    %33 = vsyncpa [#allocation9], 0
    %34 = vsyncpa [#allocation14], 0
    %35 = vsyncpa [#allocation17], 0
    // Predicated region
    $region2: #{tpu_custom_call.1} parent=1 // pred_check
      _
    $region3: #{tpu_custom_call.1} parent=1 // pred_check_branch
      %37 = sbr.rel (0) target = $region5
    $region4: #{tpu_custom_call.1} parent=1 // pred_region
      %s39 = ssub.s32 256, 256
      %40 = vsyncadd [#allocation8], %s39
      %s41 = sshll.u32 [#allocation7], 4
      %s42 = int_to_ptr.vmem [resolvable:$true] %s41
      %47 = dma.hbm_to_vmem [thread:$0]  %s4, 256, %s42, [#allocation8], 128, 128, 8
    $region5: #{tpu_custom_call.1} parent=1 // pred_fallthru
      _
    // Predicated region
    $region6: #{tpu_custom_call.1} parent=1 // pred_check
      _
    $region7: #{tpu_custom_call.1} parent=1 // pred_check_branch
      %49 = sbr.rel (0) target = $region9
    $region8: #{tpu_custom_call.1} parent=1 // pred_region
      %s51 = ssub.s32 512, 512
      %52 = vsyncadd [#allocation11], %s51
      %s53 = sshll.u32 [#allocation10], 4
      %s54 = int_to_ptr.vmem [resolvable:$true] %s53
      %59 = dma.hbm_to_vmem [thread:$0]  %s5, 512, %s54, [#allocation11], 128, 128, 8
    $region9: #{tpu_custom_call.1} parent=1 // pred_fallthru
      _
    // Predicated region
    $region10: #{tpu_custom_call.1} parent=1 // pred_check
      _
    $region11: #{tpu_custom_call.1} parent=1 // pred_check_branch
      %61 = sbr.rel (0) target = $region13
    $region12: #{tpu_custom_call.1} parent=1 // pred_region
      %62 = dma.done [#allocation8], 256
    $region13: #{tpu_custom_call.1} parent=1 // pred_fallthru
      _
    // Predicated region
    $region14: #{tpu_custom_call.1} parent=1 // pred_check
      _
    $region15: #{tpu_custom_call.1} parent=1 // pred_check_branch
      %64 = sbr.rel (0) target = $region17
    $region16: #{tpu_custom_call.1} parent=1 // pred_region
      %65 = dma.done [#allocation11], 512
    $region17: #{tpu_custom_call.1} parent=1 // pred_fallthru
      _
    %s66 = smul.u32 0, 8
    %s67 = sld [smem:[#allocation3 + %s66]]
    %s68 = scalar_lea.vmem [#allocation7], %s67
    %v69 = vld [vmem:[%s68] sm:$0x1]
    %vm70 = vcmask 253952
    %71 = vst.msk [vmem:[#allocation12] sm:$0x1] %vm70, %v69
    %s72 = sld [smem:[#allocation4 + %s66]]
    %s73 = scalar_lea.vmem [#allocation10], %s72
    %v74 = vld [vmem:[%s73] sm:$0x1]
    %75 = vst.msk [vmem:[#allocation13] sm:$0x1] %vm70, %v74
    %s76 = sld [smem:[#allocation5 + %s66]]
    %s77 = scalar_lea.vmem [#allocation10], %s76
    %v78 = vld [vmem:[%s77] sm:$0x1]
    %79 = vst.msk [vmem:[#allocation15] sm:$0x1] %vm70, %v78
    %s80 = sld [smem:[#allocation6 + %s66]]
    %s81 = scalar_lea.vmem [#allocation10], %s80
    %v82 = vld [vmem:[%s81] sm:$0x1]
    %83 = vst.msk [vmem:[#allocation16] sm:$0x1] %vm70, %v82
    %s84 = sadd.s32 %s66, 1
    %s85 = sld [smem:[#allocation3 + %s84]]
    %s86 = scalar_lea.vmem [#allocation7], %s85
    %v87 = vld [vmem:[%s86] sm:$0x1]
    %88 = vst.msk [vmem:[#allocation12 + $0x1] sm:$0x1] %vm70, %v87
    %s89 = sld [smem:[#allocation4 + %s84]]
    %s90 = scalar_lea.vmem [#allocation10], %s89
    %v91 = vld [vmem:[%s90] sm:$0x1]
    %92 = vst.msk [vmem:[#allocation13 + $0x1] sm:$0x1] %vm70, %v91
    %s93 = sld [smem:[#allocation5 + %s84]]
    %s94 = scalar_lea.vmem [#allocation10], %s93
    %v95 = vld [vmem:[%s94] sm:$0x1]
    %96 = vst.msk [vmem:[#allocation15 + $0x1] sm:$0x1] %vm70, %v95
    %s97 = sld [smem:[#allocation6 + %s84]]
    %s98 = scalar_lea.vmem [#allocation10], %s97
    %v99 = vld [vmem:[%s98] sm:$0x1]
    %100 = vst.msk [vmem:[#allocation16 + $0x1] sm:$0x1] %vm70, %v99
    %s101 = sadd.s32 %s66, 2
    %s102 = sld [smem:[#allocation3 + %s101]]
    %s103 = scalar_lea.vmem [#allocation7], %s102
    %v104 = vld [vmem:[%s103] sm:$0x1]
    %105 = vst.msk [vmem:[#allocation12 + $0x2] sm:$0x1] %vm70, %v104
    %s106 = sld [smem:[#allocation4 + %s101]]
    %s107 = scalar_lea.vmem [#allocation10], %s106
    %v108 = vld [vmem:[%s107] sm:$0x1]
    %109 = vst.msk [vmem:[#allocation13 + $0x2] sm:$0x1] %vm70, %v108
    %s110 = sld [smem:[#allocation5 + %s101]]
    %s111 = scalar_lea.vmem [#allocation10], %s110
    %v112 = vld [vmem:[%s111] sm:$0x1]
    %113 = vst.msk [vmem:[#allocation15 + $0x2] sm:$0x1] %vm70, %v112
    %s114 = sld [smem:[#allocation6 + %s101]]
    %s115 = scalar_lea.vmem [#allocation10], %s114
    %v116 = vld [vmem:[%s115] sm:$0x1]
    %117 = vst.msk [vmem:[#allocation16 + $0x2] sm:$0x1] %vm70, %v116
    %s118 = sadd.s32 %s66, 3
    %s119 = sld [smem:[#allocation3 + %s118]]
    %s120 = scalar_lea.vmem [#allocation7], %s119
    %v121 = vld [vmem:[%s120] sm:$0x1]
    %122 = vst.msk [vmem:[#allocation12 + $0x3] sm:$0x1] %vm70, %v121
    %s123 = sld [smem:[#allocation4 + %s118]]
    %s124 = scalar_lea.vmem [#allocation10], %s123
    %v125 = vld [vmem:[%s124] sm:$0x1]
    %126 = vst.msk [vmem:[#allocation13 + $0x3] sm:$0x1] %vm70, %v125
    %s127 = sld [smem:[#allocation5 + %s118]]
    %s128 = scalar_lea.vmem [#allocation10], %s127
    %v129 = vld [vmem:[%s128] sm:$0x1]
    %130 = vst.msk [vmem:[#allocation15 + $0x3] sm:$0x1] %vm70, %v129
    %s131 = sld [smem:[#allocation6 + %s118]]
    %s132 = scalar_lea.vmem [#allocation10], %s131
    %v133 = vld [vmem:[%s132] sm:$0x1]
    %134 = vst.msk [vmem:[#allocation16 + $0x3] sm:$0x1] %vm70, %v133
    %s135 = sadd.s32 %s66, 4
    %s136 = sld [smem:[#allocation3 + %s135]]
    %s137 = scalar_lea.vmem [#allocation7], %s136
    %v138 = vld [vmem:[%s137] sm:$0x1]
    %139 = vst.msk [vmem:[#allocation12 + $0x4] sm:$0x1] %vm70, %v138
    %s140 = sld [smem:[#allocation4 + %s135]]
    %s141 = scalar_lea.vmem [#allocation10], %s140
    %v142 = vld [vmem:[%s141] sm:$0x1]
    %143 = vst.msk [vmem:[#allocation13 + $0x4] sm:$0x1] %vm70, %v142
    %s144 = sld [smem:[#allocation5 + %s135]]
    %s145 = scalar_lea.vmem [#allocation10], %s144
    %v146 = vld [vmem:[%s145] sm:$0x1]
    %147 = vst.msk [vmem:[#allocation15 + $0x4] sm:$0x1] %vm70, %v146
    %s148 = sld [smem:[#allocation6 + %s135]]
    %s149 = scalar_lea.vmem [#allocation10], %s148
    %v150 = vld [vmem:[%s149] sm:$0x1]
    %151 = vst.msk [vmem:[#allocation16 + $0x4] sm:$0x1] %vm70, %v150
    %s152 = sadd.s32 %s66, 5
    %s153 = sld [smem:[#allocation3 + %s152]]
    %s154 = scalar_lea.vmem [#allocation7], %s153
    %v155 = vld [vmem:[%s154] sm:$0x1]
    %156 = vst.msk [vmem:[#allocation12 + $0x5] sm:$0x1] %vm70, %v155
    %s157 = sld [smem:[#allocation4 + %s152]]
    %s158 = scalar_lea.vmem [#allocation10], %s157
    %v159 = vld [vmem:[%s158] sm:$0x1]
    %160 = vst.msk [vmem:[#allocation13 + $0x5] sm:$0x1] %vm70, %v159
    %s161 = sld [smem:[#allocation5 + %s152]]
    %s162 = scalar_lea.vmem [#allocation10], %s161
    %v163 = vld [vmem:[%s162] sm:$0x1]
    %164 = vst.msk [vmem:[#allocation15 + $0x5] sm:$0x1] %vm70, %v163
    %s165 = sld [smem:[#allocation6 + %s152]]
    %s166 = scalar_lea.vmem [#allocation10], %s165
    %v167 = vld [vmem:[%s166] sm:$0x1]
    %168 = vst.msk [vmem:[#allocation16 + $0x5] sm:$0x1] %vm70, %v167
    %s169 = sadd.s32 %s66, 6
    %s170 = sld [smem:[#allocation3 + %s169]]
    %s171 = scalar_lea.vmem [#allocation7], %s170
    %v172 = vld [vmem:[%s171] sm:$0x1]
    %173 = vst.msk [vmem:[#allocation12 + $0x6] sm:$0x1] %vm70, %v172
    %s174 = sld [smem:[#allocation4 + %s169]]
    %s175 = scalar_lea.vmem [#allocation10], %s174
    %v176 = vld [vmem:[%s175] sm:$0x1]
    %177 = vst.msk [vmem:[#allocation13 + $0x6] sm:$0x1] %vm70, %v176
    %s178 = sld [smem:[#allocation5 + %s169]]
    %s179 = scalar_lea.vmem [#allocation10], %s178
    %v180 = vld [vmem:[%s179] sm:$0x1]
    %181 = vst.msk [vmem:[#allocation15 + $0x6] sm:$0x1] %vm70, %v180
    %s182 = sld [smem:[#allocation6 + %s169]]
    %s183 = scalar_lea.vmem [#allocation10], %s182
    %v184 = vld [vmem:[%s183] sm:$0x1]
    %185 = vst.msk [vmem:[#allocation16 + $0x6] sm:$0x1] %vm70, %v184
    %s186 = sadd.s32 %s66, 7
    %s187 = sld [smem:[#allocation3 + %s186]]
    %s188 = scalar_lea.vmem [#allocation7], %s187
    %v189 = vld [vmem:[%s188] sm:$0x1]
    %190 = vst.msk [vmem:[#allocation12 + $0x7] sm:$0x1] %vm70, %v189
    %s191 = sld [smem:[#allocation4 + %s186]]
    %s192 = scalar_lea.vmem [#allocation10], %s191
    %v193 = vld [vmem:[%s192] sm:$0x1]
    %194 = vst.msk [vmem:[#allocation13 + $0x7] sm:$0x1] %vm70, %v193
    %s195 = sld [smem:[#allocation5 + %s186]]
    %s196 = scalar_lea.vmem [#allocation10], %s195
    %v197 = vld [vmem:[%s196] sm:$0x1]
    %198 = vst.msk [vmem:[#allocation15 + $0x7] sm:$0x1] %vm70, %v197
    %s199 = sld [smem:[#allocation6 + %s186]]
    %s200 = scalar_lea.vmem [#allocation10], %s199
    %v201 = vld [vmem:[%s200] sm:$0x1]
    %202 = vst.msk [vmem:[#allocation16 + $0x7] sm:$0x1] %vm70, %v201
    // Predicated region
    $region18: #{tpu_custom_call.1} parent=1 // pred_check
      _
    $region19: #{tpu_custom_call.1} parent=1 // pred_check_branch
      %204 = sbr.rel (0) target = $region21
    $region20: #{tpu_custom_call.1} parent=1 // pred_region
      %s206 = ssub.s32 128, 128
      %207 = vsyncadd [#allocation9], %s206
      %s209 = sshll.u32 [#allocation12], 4
      %s210 = int_to_ptr.vmem [resolvable:$true] %s209
      %212 = dma.vmem_to_hbm [thread:$0]  %s210, 128, %s6, [#allocation9]
    $region21: #{tpu_custom_call.1} parent=1 // pred_fallthru
      _
    // Predicated region
    $region22: #{tpu_custom_call.1} parent=1 // pred_check
      _
    $region23: #{tpu_custom_call.1} parent=1 // pred_check_branch
      %214 = sbr.rel (0) target = $region25
    $region24: #{tpu_custom_call.1} parent=1 // pred_region
      %s216 = ssub.s32 128, 128
      %217 = vsyncadd [#allocation14], %s216
      %s219 = sshll.u32 [#allocation13], 4
      %s220 = int_to_ptr.vmem [resolvable:$true] %s219
      %222 = dma.vmem_to_hbm [thread:$0]  %s220, 128, %s7, [#allocation14]
    $region25: #{tpu_custom_call.1} parent=1 // pred_fallthru
      _
    // Predicated region
    $region26: #{tpu_custom_call.1} parent=1 // pred_check
      _
    $region27: #{tpu_custom_call.1} parent=1 // pred_check_branch
      %224 = sbr.rel (0) target = $region29
    $region28: #{tpu_custom_call.1} parent=1 // pred_region
      %s226 = ssub.s32 128, 128
      %227 = vsyncadd [#allocation14], %s226
      %s229 = sshll.u32 [#allocation15], 4
      %s230 = int_to_ptr.vmem [resolvable:$true] %s229
      %232 = dma.vmem_to_hbm [thread:$0]  %s230, 128, %s8, [#allocation14]
    $region29: #{tpu_custom_call.1} parent=1 // pred_fallthru
      _
    // Predicated region
    $region30: #{tpu_custom_call.1} parent=1 // pred_check
      _
    $region31: #{tpu_custom_call.1} parent=1 // pred_check_branch
      %234 = sbr.rel (0) target = $region33
    $region32: #{tpu_custom_call.1} parent=1 // pred_region
      %s236 = ssub.s32 128, 128
      %237 = vsyncadd [#allocation17], %s236
      %s239 = sshll.u32 [#allocation16], 4
      %s240 = int_to_ptr.vmem [resolvable:$true] %s239
      %242 = dma.vmem_to_hbm [thread:$0]  %s240, 128, %s9, [#allocation17]
    $region33: #{tpu_custom_call.1} parent=1 // pred_fallthru
      _
    // Predicated region
    $region34: #{tpu_custom_call.1} parent=1 // pred_check
      _
    $region35: #{tpu_custom_call.1} parent=1 // pred_check_branch
      %244 = sbr.rel (0) target = $region37
    $region36: #{tpu_custom_call.1} parent=1 // pred_region
      %245 = dma.done [#allocation9], 128
    $region37: #{tpu_custom_call.1} parent=1 // pred_fallthru
      _
    // Predicated region
    $region38: #{tpu_custom_call.1} parent=1 // pred_check
      _
    $region39: #{tpu_custom_call.1} parent=1 // pred_check_branch
      %247 = sbr.rel (0) target = $region41
    $region40: #{tpu_custom_call.1} parent=1 // pred_region
      %248 = dma.done [#allocation14], 128
    $region41: #{tpu_custom_call.1} parent=1 // pred_fallthru
      _
    // Predicated region
    $region42: #{tpu_custom_call.1} parent=1 // pred_check
      _
    $region43: #{tpu_custom_call.1} parent=1 // pred_check_branch
      %250 = sbr.rel (0) target = $region45
    $region44: #{tpu_custom_call.1} parent=1 // pred_region
      %251 = dma.done [#allocation14], 128
    $region45: #{tpu_custom_call.1} parent=1 // pred_fallthru
      _
    // Predicated region
    $region46: #{tpu_custom_call.1} parent=1 // pred_check
      _
    $region47: #{tpu_custom_call.1} parent=1 // pred_check_branch
      %253 = sbr.rel (0) target = $region49
    $region48: #{tpu_custom_call.1} parent=1 // pred_region
      %254 = dma.done [#allocation17], 128
    $region49: #{tpu_custom_call.1} parent=1 // pred_fallthru
      _
    %255 = vsyncpa [#allocation8], 1
    %256 = vsyncpa [#allocation11], 1
    %257 = vsyncpa [#allocation9], 1
    %258 = vsyncpa [#allocation14], 1
    %259 = vsyncpa [#allocation17], 1

</llo_original>
